<compile_context>
chip_gen: v7x
topology: tpu7x:2x2x1
jax: 0.10.0
libtpu: 0.0.40
codegen_flags: <defaults>
</compile_context>

<pallas_src>
import jax
import jax.numpy as jnp
from jax.experimental import pallas as pl
from jax.experimental.pallas import tpu as pltpu


def _make_ske_loss_kernel(num_classes, tile_rows, beta, ignore_index):
    n_cls = num_classes - 1
    eps = 1e-4
    # Faithful to PyTorch: `importance[ves_i == ignore_index] = 0` compares the
    # *binarized* 0/1 mask with ignore_index, so it is a no-op unless
    # ignore_index is 0 or 1.  Skip it statically in the common case (255).
    apply_ignore = int(ignore_index) in (0, 1)

    def kernel(probs_ref, lab_ref, out_ref, num_acc, den1_acc, den2_acc):
        s = pl.program_id(1)                       # spatial tile index
        ci = pl.program_id(2)                      # class index - 1 (classes 1..C-1)

        @pl.when(s == 0)
        def _init():
            zeros = jnp.zeros((8, 128), jnp.float32)
            num_acc[ci] = zeros
            den1_acc[ci] = zeros
            den2_acc[ci] = zeros

        cls = ci + 1
        probs = probs_ref[0, 0].astype(jnp.float32)     # (T, 128) bf16/f32 -> f32
        ves = lab_ref[0, 0]                             # (T, 128) int8
        ske = lab_ref[0, 1]                             # (T, 128) int8

        ves_i = (ves == cls).astype(jnp.float32)
        ske_i = (ske == cls).astype(jnp.float32)

        # Fused arithmetic:
        #   importance = 1 - ves_i + ske_i + 0.1 = t + (1 - ves_i),  t = ske_i + 0.1
        #   ves_i * importance == ves_i * t  (since ves_i in {0, 1})
        t = ske_i + 0.1
        w1 = ves_i * t                                  # = ves_i * importance
        imp = t + (1.0 - ves_i)                         # = importance

        if apply_ignore:
            keep = (ves_i != float(ignore_index)).astype(jnp.float32)
            w1 = w1 * keep
            imp = imp * keep

        def fold(x):                                    # (T,128) -> (8,128), vreg adds only
            return x.reshape(tile_rows // 8, 8, 128).sum(axis=0)

        num_acc[ci] = num_acc[ci] + fold(probs * w1)    # Σ probs * ves_i * importance
        den1_acc[ci] = den1_acc[ci] + fold(probs * imp) # Σ probs * importance
        den2_acc[ci] = den2_acc[ci] + fold(w1)          # Σ ves_i * importance

        @pl.when((s == pl.num_programs(1) - 1) & (ci == n_cls - 1))
        def _finalize():
            # All per-class accumulators for this batch are complete here.
            for j in range(n_cls):                      # static loop -> static stores
                num = jnp.sum(num_acc[j])
                den1 = jnp.sum(den1_acc[j])
                den2 = jnp.sum(den2_acc[j])
                score = ((1.0 + beta) * num + eps) / (den1 + beta * den2 + eps)
                out_ref[0, j:j + 1, :] = jnp.broadcast_to(score, (1, 128))

    return kernel


def ske_loss_multiclass(output, labels, ignore_index=255, beta=25.0, tile_rows=512):
    """output: (B, C, D, H, W) float (any float dtype); labels: (B, 2, D, H, W) int.

    Returns (loss, [stop_gradient(loss)]), matching the PyTorch module's forward.
    """
    B, C, D, H, W = output.shape
    assert C > 2                     # faithful to the PyTorch assert (num_classes > 2)
    assert labels.shape == (B, 2, D, H, W)
    S = D * H * W

    # ---- choose the spatial tile (rows of 128 lanes) --------------------------------
    rows = -(-S // 128)
    if rows <= tile_rows:                                 # single spatial tile
        rows = -(-rows // 8) * 8                          # keep sublane dim % 8 == 0
        T = rows
    else:
        T = max(32, (min(tile_rows, rows) // 32) * 32)    # int8 labels: tile rows % 32 == 0
        for cand in range(T, max(T // 2, 32) - 1, -32):   # prefer a tile that divides rows
            if rows % cand == 0:
                T = cand
                break
        else:
            rows = -(-rows // T) * T                      # awkward size: zero-pad up (exact)
    n_s = rows // T
    pad = rows * 128 - S

    # ---- lay out inputs as lane-dense tiles (no dtype upcast of probs) --------------
    probs = output.reshape(B, C, S)                       # keep native dtype in HBM
    lab = labels.reshape(B, 2, S)
    if lab.dtype != jnp.int8:
        lab = lab.astype(jnp.int8)                        # class ids are tiny; 4x less traffic
    if pad:
        # Zero padding is exact: padded labels give w1 = 0 and padded probs give 0
        # contributions to every reduction.  Only hit when S is not already aligned.
        probs = jnp.pad(probs, ((0, 0), (0, 0), (0, pad)))
        lab = jnp.pad(lab, ((0, 0), (0, 0), (0, pad)))
    probs = probs.reshape(B, C, rows, 128)
    lab = lab.reshape(B, 2, rows, 128)

    kernel = _make_ske_loss_kernel(C, T, float(beta), int(ignore_index))

    out = pl.pallas_call(
        kernel,
        out_shape=jax.ShapeDtypeStruct((B, 8, 128), jnp.float32),
        grid_spec=pltpu.PrefetchScalarGridSpec(
            num_scalar_prefetch=0,
            # class axis innermost: the label tile is fetched once per spatial tile
            # and reused for all C-1 foreground classes.
            grid=(B, n_s, C - 1),
            in_specs=[
                pl.BlockSpec((1, 1, T, 128), lambda b, s, c: (b, c + 1, s, 0)),  # probs
                pl.BlockSpec((1, 2, T, 128), lambda b, s, c: (b, 0, s, 0)),      # ves+ske
            ],
            out_specs=pl.BlockSpec((1, 8, 128), lambda b, s, c: (b, 0, 0)),
            scratch_shapes=[
                pltpu.VMEM((C - 1, 8, 128), jnp.float32),   # num accumulators
                pltpu.VMEM((C - 1, 8, 128), jnp.float32),   # den1 accumulators
                pltpu.VMEM((C - 1, 8, 128), jnp.float32),   # den2 accumulators
            ],
        ),
        compiler_params=pltpu.CompilerParams(
            dimension_semantics=("parallel", "arbitrary", "arbitrary")),
    )(probs, lab)

    scores = out[:, : C - 1, 0]                  # (B, C-1) per-(batch, class) scores
    final_loss = -jnp.mean(scores)               # == -(1/B) Σ_b (1/(C-1)) Σ_i score_bi
    # TODO(synk): no custom VJP is defined; wrap with jax.custom_vjp (analytic dL/dprobs)
    # before using this under jax.grad as a training loss.
    return final_loss, [jax.lax.stop_gradient(final_loss)]


def _reference_loss(output, labels, ignore_index=255, beta=25.0):
    """Pure-JAX replica of the PyTorch forward (for verification)."""
    B, C = output.shape[0], output.shape[1]
    ves = labels[:, 0]
    ske = labels[:, 1]
    total = jnp.float32(0.0)
    for bs in range(B):
        ske_eso = jnp.float32(0.0)
        for i in range(1, C):
            probs = output[bs, i].astype(jnp.float32)
            ves_i = (ves[bs] == i).astype(jnp.float32)
            ske_i = (ske[bs] == i).astype(jnp.float32)
            imp = 1.0 - ves_i + ske_i + 0.1
            imp = jnp.where(ves_i == float(ignore_index), 0.0, imp)
            num = jnp.sum(probs * ves_i * imp)
            den1 = jnp.sum(probs * imp)
            den2 = jnp.sum(ves_i * imp)
            eps = 1e-4
            ske_eso = ske_eso + ((1.0 + beta) * num + eps) / (den1 + beta * den2 + eps)
        total = total + ske_eso / (C - 1)
    return -total / B


if __name__ == "__main__":
    key = jax.random.PRNGKey(0)
    k1, k2 = jax.random.split(key)

    B, C, D, H, W = 2, 4, 8, 32, 32              # S = 8192 -> 64 rows of 128 lanes
    logits = jax.random.normal(k1, (B, C, D, H, W), dtype=jnp.float32)
    output = jax.nn.softmax(logits, axis=1).astype(jnp.bfloat16)   # probs stay bf16 in HBM
    labels = jax.random.randint(k2, (B, 2, D, H, W), 0, C, dtype=jnp.int32).astype(jnp.int8)

    # tile_rows=32 -> 2 spatial tiles per (batch, class): exercises the accumulator path.
    loss, detached = ske_loss_multiclass(output, labels, tile_rows=32)
    jax.block_until_ready(loss)

    ref = _reference_loss(output, labels)
    jax.block_until_ready(ref)

    assert jnp.allclose(loss, ref, rtol=1e-4, atol=1e-5), (loss, ref)
    print("KERNEL_OK")
</pallas_src>

<mosaic_0001>
module attributes {stable_mosaic.version = 11 : i64} {
  func.func @kernel(%arg0: i32, %arg1: i32, %arg2: i32, %arg3: memref<1x1x32x128xbf16, #tpu.memory_space<vmem>>, %arg4: memref<1x2x32x128xi8, #tpu.memory_space<vmem>>, %arg5: memref<1x8x128xf32, #tpu.memory_space<vmem>>, %arg6: memref<3x8x128xf32, #tpu.memory_space<vmem>>, %arg7: memref<3x8x128xf32, #tpu.memory_space<vmem>>, %arg8: memref<3x8x128xf32, #tpu.memory_space<vmem>>) attributes {dimension_semantics = [#tpu.dimension_semantics<parallel>, #tpu.dimension_semantics<arbitrary>, #tpu.dimension_semantics<arbitrary>], iteration_bounds = array<i64: 2, 2, 3>, scalar_prefetch = 0 : i64, scratch_operands = 3 : i64, tpu.core_type = #tpu.core_type<tc>, window_params = [{transform_indices = @transform_0, window_bounds = array<i64: 1, 1, 32, 128>}, {transform_indices = @transform_1, window_bounds = array<i64: 1, 2, 32, 128>}, {transform_indices = @transform_2, window_bounds = array<i64: 1, 8, 128>}]} {
    %c0_i32 = arith.constant 0 : i32
    %0 = arith.cmpi eq, %arg1, %c0_i32 : i32
    %1 = arith.extui %0 : i1 to i32
    %c0_i32_0 = arith.constant 0 : i32
    %2 = arith.cmpi ne, %1, %c0_i32_0 : i32
    scf.if %2 {
      %cst_29 = arith.constant 0.000000e+00 : f32
      %64 = vector.broadcast %cst_29 : f32 to vector<8x128xf32>
      %65 = arith.index_cast %arg2 : i32 to index
      %c0_30 = arith.constant 0 : index
      %c0_31 = arith.constant 0 : index
      %66 = vector.load %arg6[%65, %c0_30, %c0_31] : memref<3x8x128xf32, #tpu.memory_space<vmem>>, vector<1x8x128xf32>
      %67 = vector.shape_cast %66 : vector<1x8x128xf32> to vector<8x128xf32>
      %68 = vector.shape_cast %64 : vector<8x128xf32> to vector<1x8x128xf32>
      tpu.vector_store %arg6[%65, %c0_30, %c0_31], %68 {strides = array<i32>} : memref<3x8x128xf32, #tpu.memory_space<vmem>>, vector<1x8x128xf32>,
      %69 = arith.index_cast %arg2 : i32 to index
      %c0_32 = arith.constant 0 : index
      %c0_33 = arith.constant 0 : index
      %70 = vector.load %arg7[%69, %c0_32, %c0_33] : memref<3x8x128xf32, #tpu.memory_space<vmem>>, vector<1x8x128xf32>
      %71 = vector.shape_cast %70 : vector<1x8x128xf32> to vector<8x128xf32>
      %72 = vector.shape_cast %64 : vector<8x128xf32> to vector<1x8x128xf32>
      tpu.vector_store %arg7[%69, %c0_32, %c0_33], %72 {strides = array<i32>} : memref<3x8x128xf32, #tpu.memory_space<vmem>>, vector<1x8x128xf32>,
      %73 = arith.index_cast %arg2 : i32 to index
      %c0_34 = arith.constant 0 : index
      %c0_35 = arith.constant 0 : index
      %74 = vector.load %arg8[%73, %c0_34, %c0_35] : memref<3x8x128xf32, #tpu.memory_space<vmem>>, vector<1x8x128xf32>
      %75 = vector.shape_cast %74 : vector<1x8x128xf32> to vector<8x128xf32>
      %76 = vector.shape_cast %64 : vector<8x128xf32> to vector<1x8x128xf32>
      tpu.vector_store %arg8[%73, %c0_34, %c0_35], %76 {strides = array<i32>} : memref<3x8x128xf32, #tpu.memory_space<vmem>>, vector<1x8x128xf32>,
    } else {
    }
    %c1_i32 = arith.constant 1 : i32
    %3 = arith.addi %arg2, %c1_i32 : i32
    %c0 = arith.constant 0 : index
    %c0_1 = arith.constant 0 : index
    %c0_2 = arith.constant 0 : index
    %c0_3 = arith.constant 0 : index
    %4 = vector.load %arg3[%c0, %c0_1, %c0_2, %c0_3] : memref<1x1x32x128xbf16, #tpu.memory_space<vmem>>, vector<1x1x32x128xbf16>
    %5 = vector.shape_cast %4 : vector<1x1x32x128xbf16> to vector<32x128xbf16>
    %6 = arith.extf %5 : vector<32x128xbf16> to vector<32x128xf32>
    %c0_4 = arith.constant 0 : index
    %c0_5 = arith.constant 0 : index
    %c0_6 = arith.constant 0 : index
    %c0_7 = arith.constant 0 : index
    %7 = vector.load %arg4[%c0_4, %c0_5, %c0_6, %c0_7] : memref<1x2x32x128xi8, #tpu.memory_space<vmem>>, vector<1x1x32x128xi8>
    %8 = vector.shape_cast %7 : vector<1x1x32x128xi8> to vector<32x128xi8>
    %c0_8 = arith.constant 0 : index
    %c1 = arith.constant 1 : index
    %c0_9 = arith.constant 0 : index
    %c0_10 = arith.constant 0 : index
    %9 = vector.load %arg4[%c0_8, %c1, %c0_9, %c0_10] : memref<1x2x32x128xi8, #tpu.memory_space<vmem>>, vector<1x1x32x128xi8>
    %10 = vector.shape_cast %9 : vector<1x1x32x128xi8> to vector<32x128xi8>
    %11 = arith.extsi %8 : vector<32x128xi8> to vector<32x128xi32>
    %12 = vector.broadcast %3 : i32 to vector<32x128xi32>
    %13 = arith.cmpi eq, %11, %12 : vector<32x128xi32>
    %14 = arith.extui %13 : vector<32x128xi1> to vector<32x128xi32>
    %15 = arith.sitofp %14 : vector<32x128xi32> to vector<32x128xf32>
    %16 = arith.extsi %10 : vector<32x128xi8> to vector<32x128xi32>
    %17 = vector.broadcast %3 : i32 to vector<32x128xi32>
    %18 = arith.cmpi eq, %16, %17 : vector<32x128xi32>
    %19 = arith.extui %18 : vector<32x128xi1> to vector<32x128xi32>
    %20 = arith.sitofp %19 : vector<32x128xi32> to vector<32x128xf32>
    %cst = arith.constant 1.000000e-01 : f32
    %21 = vector.broadcast %cst : f32 to vector<32x128xf32>
    %22 = arith.addf %20, %21 : vector<32x128xf32>
    %23 = arith.mulf %15, %22 : vector<32x128xf32>
    %cst_11 = arith.constant 1.000000e+00 : f32
    %24 = vector.broadcast %cst_11 : f32 to vector<32x128xf32>
    %25 = arith.subf %24, %15 : vector<32x128xf32>
    %26 = arith.addf %22, %25 : vector<32x128xf32>
    %27 = arith.index_cast %arg2 : i32 to index
    %c0_12 = arith.constant 0 : index
    %c0_13 = arith.constant 0 : index
    %28 = vector.load %arg6[%27, %c0_12, %c0_13] : memref<3x8x128xf32, #tpu.memory_space<vmem>>, vector<1x8x128xf32>
    %29 = vector.shape_cast %28 : vector<1x8x128xf32> to vector<8x128xf32>
    %30 = arith.mulf %6, %23 : vector<32x128xf32>
    %31 = vector.shape_cast %30 : vector<32x128xf32> to vector<4x8x128xf32>
    %cst_14 = arith.constant dense<0.000000e+00> : vector<8x128xf32>
    %32 = vector.multi_reduction <add>, %31, %cst_14 [0] : vector<4x8x128xf32> to vector<8x128xf32>
    %33 = arith.addf %29, %32 : vector<8x128xf32>
    %34 = arith.index_cast %arg2 : i32 to index
    %c0_15 = arith.constant 0 : index
    %c0_16 = arith.constant 0 : index
    %35 = vector.load %arg6[%34, %c0_15, %c0_16] : memref<3x8x128xf32, #tpu.memory_space<vmem>>, vector<1x8x128xf32>
    %36 = vector.shape_cast %35 : vector<1x8x128xf32> to vector<8x128xf32>
    %37 = vector.shape_cast %33 : vector<8x128xf32> to vector<1x8x128xf32>
    tpu.vector_store %arg6[%34, %c0_15, %c0_16], %37 {strides = array<i32>} : memref<3x8x128xf32, #tpu.memory_space<vmem>>, vector<1x8x128xf32>,
    %38 = arith.index_cast %arg2 : i32 to index
    %c0_17 = arith.constant 0 : index
    %c0_18 = arith.constant 0 : index
    %39 = vector.load %arg7[%38, %c0_17, %c0_18] : memref<3x8x128xf32, #tpu.memory_space<vmem>>, vector<1x8x128xf32>
    %40 = vector.shape_cast %39 : vector<1x8x128xf32> to vector<8x128xf32>
    %41 = arith.mulf %6, %26 : vector<32x128xf32>
    %42 = vector.shape_cast %41 : vector<32x128xf32> to vector<4x8x128xf32>
    %cst_19 = arith.constant dense<0.000000e+00> : vector<8x128xf32>
    %43 = vector.multi_reduction <add>, %42, %cst_19 [0] : vector<4x8x128xf32> to vector<8x128xf32>
    %44 = arith.addf %40, %43 : vector<8x128xf32>
    %45 = arith.index_cast %arg2 : i32 to index
    %c0_20 = arith.constant 0 : index
    %c0_21 = arith.constant 0 : index
    %46 = vector.load %arg7[%45, %c0_20, %c0_21] : memref<3x8x128xf32, #tpu.memory_space<vmem>>, vector<1x8x128xf32>
    %47 = vector.shape_cast %46 : vector<1x8x128xf32> to vector<8x128xf32>
    %48 = vector.shape_cast %44 : vector<8x128xf32> to vector<1x8x128xf32>
    tpu.vector_store %arg7[%45, %c0_20, %c0_21], %48 {strides = array<i32>} : memref<3x8x128xf32, #tpu.memory_space<vmem>>, vector<1x8x128xf32>,
    %49 = arith.index_cast %arg2 : i32 to index
    %c0_22 = arith.constant 0 : index
    %c0_23 = arith.constant 0 : index
    %50 = vector.load %arg8[%49, %c0_22, %c0_23] : memref<3x8x128xf32, #tpu.memory_space<vmem>>, vector<1x8x128xf32>
    %51 = vector.shape_cast %50 : vector<1x8x128xf32> to vector<8x128xf32>
    %52 = vector.shape_cast %23 : vector<32x128xf32> to vector<4x8x128xf32>
    %cst_24 = arith.constant dense<0.000000e+00> : vector<8x128xf32>
    %53 = vector.multi_reduction <add>, %52, %cst_24 [0] : vector<4x8x128xf32> to vector<8x128xf32>
    %54 = arith.addf %51, %53 : vector<8x128xf32>
    %55 = arith.index_cast %arg2 : i32 to index
    %c0_25 = arith.constant 0 : index
    %c0_26 = arith.constant 0 : index
    %56 = vector.load %arg8[%55, %c0_25, %c0_26] : memref<3x8x128xf32, #tpu.memory_space<vmem>>, vector<1x8x128xf32>
    %57 = vector.shape_cast %56 : vector<1x8x128xf32> to vector<8x128xf32>
    %58 = vector.shape_cast %54 : vector<8x128xf32> to vector<1x8x128xf32>
    tpu.vector_store %arg8[%55, %c0_25, %c0_26], %58 {strides = array<i32>} : memref<3x8x128xf32, #tpu.memory_space<vmem>>, vector<1x8x128xf32>,
    %c1_i32_27 = arith.constant 1 : i32
    %59 = arith.cmpi eq, %arg1, %c1_i32_27 : i32
    %c2_i32 = arith.constant 2 : i32
    %60 = arith.cmpi eq, %arg2, %c2_i32 : i32
    %61 = arith.andi %59, %60 : i1
    %62 = arith.extui %61 : i1 to i32
    %c0_i32_28 = arith.constant 0 : i32
    %63 = arith.cmpi ne, %62, %c0_i32_28 : i32
    scf.if %63 {
      %c0_29 = arith.constant 0 : index
      %c0_30 = arith.constant 0 : index
      %c0_31 = arith.constant 0 : index
      %64 = vector.load %arg6[%c0_29, %c0_30, %c0_31] : memref<3x8x128xf32, #tpu.memory_space<vmem>>, vector<1x8x128xf32>
      %65 = vector.shape_cast %64 : vector<1x8x128xf32> to vector<8x128xf32>
      %66 = vector.shape_cast %65 : vector<8x128xf32> to vector<1x8x128xf32>
      %cst_32 = arith.constant dense<0.000000e+00> : vector<1xf32>
      %67 = vector.multi_reduction <add>, %66, %cst_32 [1, 2] : vector<1x8x128xf32> to vector<1xf32>
      %68 = vector.shape_cast %67 : vector<1xf32> to vector<1x1x1xf32>
      %69 = vector.extract %68[0, 0, 0] : f32 from vector<1x1x1xf32>
      %c0_33 = arith.constant 0 : index
      %c0_34 = arith.constant 0 : index
      %c0_35 = arith.constant 0 : index
      %70 = vector.load %arg7[%c0_33, %c0_34, %c0_35] : memref<3x8x128xf32, #tpu.memory_space<vmem>>, vector<1x8x128xf32>
      %71 = vector.shape_cast %70 : vector<1x8x128xf32> to vector<8x128xf32>
      %72 = vector.shape_cast %71 : vector<8x128xf32> to vector<1x8x128xf32>
      %cst_36 = arith.constant dense<0.000000e+00> : vector<1xf32>
      %73 = vector.multi_reduction <add>, %72, %cst_36 [1, 2] : vector<1x8x128xf32> to vector<1xf32>
      %74 = vector.shape_cast %73 : vector<1xf32> to vector<1x1x1xf32>
      %75 = vector.extract %74[0, 0, 0] : f32 from vector<1x1x1xf32>
      %c0_37 = arith.constant 0 : index
      %c0_38 = arith.constant 0 : index
      %c0_39 = arith.constant 0 : index
      %76 = vector.load %arg8[%c0_37, %c0_38, %c0_39] : memref<3x8x128xf32, #tpu.memory_space<vmem>>, vector<1x8x128xf32>
      %77 = vector.shape_cast %76 : vector<1x8x128xf32> to vector<8x128xf32>
      %78 = vector.shape_cast %77 : vector<8x128xf32> to vector<1x8x128xf32>
      %cst_40 = arith.constant dense<0.000000e+00> : vector<1xf32>
      %79 = vector.multi_reduction <add>, %78, %cst_40 [1, 2] : vector<1x8x128xf32> to vector<1xf32>
      %80 = vector.shape_cast %79 : vector<1xf32> to vector<1x1x1xf32>
      %81 = vector.extract %80[0, 0, 0] : f32 from vector<1x1x1xf32>
      %cst_41 = arith.constant 2.600000e+01 : f32
      %82 = arith.mulf %cst_41, %69 : f32
      %cst_42 = arith.constant 9.99999974E-5 : f32
      %83 = arith.addf %82, %cst_42 : f32
      %cst_43 = arith.constant 2.500000e+01 : f32
      %84 = arith.mulf %cst_43, %81 : f32
      %85 = arith.addf %75, %84 : f32
      %cst_44 = arith.constant 9.99999974E-5 : f32
      %86 = arith.addf %85, %cst_44 : f32
      %87 = arith.divf %83, %86 : f32
      %88 = vector.broadcast %87 : f32 to vector<1x128xf32>
      %c0_45 = arith.constant 0 : index
      %c0_46 = arith.constant 0 : index
      %c0_47 = arith.constant 0 : index
      %89 = vector.load %arg5[%c0_45, %c0_46, %c0_47] : memref<1x8x128xf32, #tpu.memory_space<vmem>>, vector<1x1x128xf32>
      %90 = vector.shape_cast %89 : vector<1x1x128xf32> to vector<1x128xf32>
      %91 = vector.shape_cast %88 : vector<1x128xf32> to vector<1x1x128xf32>
      tpu.vector_store %arg5[%c0_45, %c0_46, %c0_47], %91 {strides = array<i32>} : memref<1x8x128xf32, #tpu.memory_space<vmem>>, vector<1x1x128xf32>,
      %c1_48 = arith.constant 1 : index
      %c0_49 = arith.constant 0 : index
      %c0_50 = arith.constant 0 : index
      %92 = vector.load %arg6[%c1_48, %c0_49, %c0_50] : memref<3x8x128xf32, #tpu.memory_space<vmem>>, vector<1x8x128xf32>
      %93 = vector.shape_cast %92 : vector<1x8x128xf32> to vector<8x128xf32>
      %94 = vector.shape_cast %93 : vector<8x128xf32> to vector<1x8x128xf32>
      %cst_51 = arith.constant dense<0.000000e+00> : vector<1xf32>
      %95 = vector.multi_reduction <add>, %94, %cst_51 [1, 2] : vector<1x8x128xf32> to vector<1xf32>
      %96 = vector.shape_cast %95 : vector<1xf32> to vector<1x1x1xf32>
      %97 = vector.extract %96[0, 0, 0] : f32 from vector<1x1x1xf32>
      %c1_52 = arith.constant 1 : index
      %c0_53 = arith.constant 0 : index
      %c0_54 = arith.constant 0 : index
      %98 = vector.load %arg7[%c1_52, %c0_53, %c0_54] : memref<3x8x128xf32, #tpu.memory_space<vmem>>, vector<1x8x128xf32>
      %99 = vector.shape_cast %98 : vector<1x8x128xf32> to vector<8x128xf32>
      %100 = vector.shape_cast %99 : vector<8x128xf32> to vector<1x8x128xf32>
      %cst_55 = arith.constant dense<0.000000e+00> : vector<1xf32>
      %101 = vector.multi_reduction <add>, %100, %cst_55 [1, 2] : vector<1x8x128xf32> to vector<1xf32>
      %102 = vector.shape_cast %101 : vector<1xf32> to vector<1x1x1xf32>
      %103 = vector.extract %102[0, 0, 0] : f32 from vector<1x1x1xf32>
      %c1_56 = arith.constant 1 : index
      %c0_57 = arith.constant 0 : index
      %c0_58 = arith.constant 0 : index
      %104 = vector.load %arg8[%c1_56, %c0_57, %c0_58] : memref<3x8x128xf32, #tpu.memory_space<vmem>>, vector<1x8x128xf32>
      %105 = vector.shape_cast %104 : vector<1x8x128xf32> to vector<8x128xf32>
      %106 = vector.shape_cast %105 : vector<8x128xf32> to vector<1x8x128xf32>
      %cst_59 = arith.constant dense<0.000000e+00> : vector<1xf32>
      %107 = vector.multi_reduction <add>, %106, %cst_59 [1, 2] : vector<1x8x128xf32> to vector<1xf32>
      %108 = vector.shape_cast %107 : vector<1xf32> to vector<1x1x1xf32>
      %109 = vector.extract %108[0, 0, 0] : f32 from vector<1x1x1xf32>
      %cst_60 = arith.constant 2.600000e+01 : f32
      %110 = arith.mulf %cst_60, %97 : f32
      %cst_61 = arith.constant 9.99999974E-5 : f32
      %111 = arith.addf %110, %cst_61 : f32
      %cst_62 = arith.constant 2.500000e+01 : f32
      %112 = arith.mulf %cst_62, %109 : f32
      %113 = arith.addf %103, %112 : f32
      %cst_63 = arith.constant 9.99999974E-5 : f32
      %114 = arith.addf %113, %cst_63 : f32
      %115 = arith.divf %111, %114 : f32
      %116 = vector.broadcast %115 : f32 to vector<1x128xf32>
      %c0_64 = arith.constant 0 : index
      %c1_65 = arith.constant 1 : index
      %c0_66 = arith.constant 0 : index
      %117 = vector.load %arg5[%c0_64, %c1_65, %c0_66] : memref<1x8x128xf32, #tpu.memory_space<vmem>>, vector<1x1x128xf32>
      %118 = vector.shape_cast %117 : vector<1x1x128xf32> to vector<1x128xf32>
      %119 = vector.shape_cast %116 : vector<1x128xf32> to vector<1x1x128xf32>
      tpu.vector_store %arg5[%c0_64, %c1_65, %c0_66], %119 {strides = array<i32>} : memref<1x8x128xf32, #tpu.memory_space<vmem>>, vector<1x1x128xf32>,
      %c2 = arith.constant 2 : index
      %c0_67 = arith.constant 0 : index
      %c0_68 = arith.constant 0 : index
      %120 = vector.load %arg6[%c2, %c0_67, %c0_68] : memref<3x8x128xf32, #tpu.memory_space<vmem>>, vector<1x8x128xf32>
      %121 = vector.shape_cast %120 : vector<1x8x128xf32> to vector<8x128xf32>
      %122 = vector.shape_cast %121 : vector<8x128xf32> to vector<1x8x128xf32>
      %cst_69 = arith.constant dense<0.000000e+00> : vector<1xf32>
      %123 = vector.multi_reduction <add>, %122, %cst_69 [1, 2] : vector<1x8x128xf32> to vector<1xf32>
      %124 = vector.shape_cast %123 : vector<1xf32> to vector<1x1x1xf32>
      %125 = vector.extract %124[0, 0, 0] : f32 from vector<1x1x1xf32>
      %c2_70 = arith.constant 2 : index
      %c0_71 = arith.constant 0 : index
      %c0_72 = arith.constant 0 : index
      %126 = vector.load %arg7[%c2_70, %c0_71, %c0_72] : memref<3x8x128xf32, #tpu.memory_space<vmem>>, vector<1x8x128xf32>
      %127 = vector.shape_cast %126 : vector<1x8x128xf32> to vector<8x128xf32>
      %128 = vector.shape_cast %127 : vector<8x128xf32> to vector<1x8x128xf32>
      %cst_73 = arith.constant dense<0.000000e+00> : vector<1xf32>
      %129 = vector.multi_reduction <add>, %128, %cst_73 [1, 2] : vector<1x8x128xf32> to vector<1xf32>
      %130 = vector.shape_cast %129 : vector<1xf32> to vector<1x1x1xf32>
      %131 = vector.extract %130[0, 0, 0] : f32 from vector<1x1x1xf32>
      %c2_74 = arith.constant 2 : index
      %c0_75 = arith.constant 0 : index
      %c0_76 = arith.constant 0 : index
      %132 = vector.load %arg8[%c2_74, %c0_75, %c0_76] : memref<3x8x128xf32, #tpu.memory_space<vmem>>, vector<1x8x128xf32>
      %133 = vector.shape_cast %132 : vector<1x8x128xf32> to vector<8x128xf32>
      %134 = vector.shape_cast %133 : vector<8x128xf32> to vector<1x8x128xf32>
      %cst_77 = arith.constant dense<0.000000e+00> : vector<1xf32>
      %135 = vector.multi_reduction <add>, %134, %cst_77 [1, 2] : vector<1x8x128xf32> to vector<1xf32>
      %136 = vector.shape_cast %135 : vector<1xf32> to vector<1x1x1xf32>
      %137 = vector.extract %136[0, 0, 0] : f32 from vector<1x1x1xf32>
      %cst_78 = arith.constant 2.600000e+01 : f32
      %138 = arith.mulf %cst_78, %125 : f32
      %cst_79 = arith.constant 9.99999974E-5 : f32
      %139 = arith.addf %138, %cst_79 : f32
      %cst_80 = arith.constant 2.500000e+01 : f32
      %140 = arith.mulf %cst_80, %137 : f32
      %141 = arith.addf %131, %140 : f32
      %cst_81 = arith.constant 9.99999974E-5 : f32
      %142 = arith.addf %141, %cst_81 : f32
      %143 = arith.divf %139, %142 : f32
      %144 = vector.broadcast %143 : f32 to vector<1x128xf32>
      %c0_82 = arith.constant 0 : index
      %c2_83 = arith.constant 2 : index
      %c0_84 = arith.constant 0 : index
      %145 = vector.load %arg5[%c0_82, %c2_83, %c0_84] : memref<1x8x128xf32, #tpu.memory_space<vmem>>, vector<1x1x128xf32>
      %146 = vector.shape_cast %145 : vector<1x1x128xf32> to vector<1x128xf32>
      %147 = vector.shape_cast %144 : vector<1x128xf32> to vector<1x1x128xf32>
      tpu.vector_store %arg5[%c0_82, %c2_83, %c0_84], %147 {strides = array<i32>} : memref<1x8x128xf32, #tpu.memory_space<vmem>>, vector<1x1x128xf32>,
    } else {
    }
    return
  }
  func.func @transform_0(%arg0: i32, %arg1: i32, %arg2: i32) -> (i32, i32, i32, i32) {
    %c1_i32 = arith.constant 1 : i32
    %0 = arith.addi %arg2, %c1_i32 : i32
    %c0_i32 = arith.constant 0 : i32
    %c0_i32_0 = arith.constant 0 : i32
    return %arg0, %0, %arg1, %c0_i32 : i32, i32, i32, i32
  }
  func.func @transform_1(%arg0: i32, %arg1: i32, %arg2: i32) -> (i32, i32, i32, i32) {
    %c0_i32 = arith.constant 0 : i32
    %c0_i32_0 = arith.constant 0 : i32
    %c0_i32_1 = arith.constant 0 : i32
    return %arg0, %c0_i32, %arg1, %c0_i32_0 : i32, i32, i32, i32
  }
  func.func @transform_2(%arg0: i32, %arg1: i32, %arg2: i32) -> (i32, i32, i32) {
    %c0_i32 = arith.constant 0 : i32
    %c0_i32_0 = arith.constant 0 : i32
    %c0_i32_1 = arith.constant 0 : i32
    return %arg0, %c0_i32, %c0_i32_0 : i32, i32, i32
  }
}

</mosaic_0001>

<llo_original>
// kernel: tpu_custom_call.1
$region0: #{tpu_custom_call.1}
  #allocation0 [shape = 'u32[]', space=smem, size = 0x4, offset = 0x4, fixed_abs, tag = 'smem constant byte address 0x4 - core index']
  #allocation1 [shape = 'u32[144,128]{1,0:T(1,128)}', space=vmem, size = 0x12000, scoped, tag = 'internal scratch']
  #allocation2 [shape = 'f32[3,8,128]{2,1,0:T(8,128)}', space=vmem, size = 0x3000, scoped, tag = 'scratch operand']
  #allocation3 [shape = 'f32[3,8,128]{2,1,0:T(8,128)}', space=vmem, size = 0x3000, scoped, tag = 'scratch operand']
  #allocation4 [shape = 'f32[3,8,128]{2,1,0:T(8,128)}', space=vmem, size = 0x3000, scoped, tag = 'scratch operand']
  %s0 = inlined_call_operand.hbm [shape: bf16[2,4,64,128], index: 0, kind: input, shape index: {}]
  %s1 = inlined_call_operand.hbm [shape: s8[2,2,64,128], index: 1, kind: input, shape index: {}]
  %s2 = inlined_call_operand.hbm [shape: f32[2,8,128], index: 2, kind: output, shape index: {}]
  %s3 = sld [smem:[#allocation0]]
  $region57: #{tpu_custom_call.1} parent=0
    _
  %s5 = ssub.s32 1, %s3
  %s6 = scalar_select 0, %s5, %s3
  $region1: #{tpu_custom_call.1} parent=0
    #allocation5 [shape = 'u8[16384]{0}', space=vmem, size = 0x4000, scoped, tag = 'input window, operand 0']
    #allocation6 [shape = 's32[2]{0}', space=sflag, size = 0x8, scoped, tag = 'scoped memory for tpu_custom_call.1']
    #allocation7 [shape = 's32[2]{0}', space=sflag, size = 0x8, scoped, tag = 'scoped memory for tpu_custom_call.1']
    #allocation8 [shape = 'u8[16384]{0}', space=vmem, size = 0x4000, scoped, tag = 'input window, operand 1']
    #allocation9 [shape = 's32[2]{0}', space=sflag, size = 0x8, scoped, tag = 'scoped memory for tpu_custom_call.1']
    #allocation10 [shape = 'u8[8192]{0}', space=vmem, size = 0x2000, scoped, tag = 'output window, operand 0']
    %7 = vsyncpa [#allocation6], 0
    %s8 = scalar_lea.sflag [#allocation6], 1
    %9 = vsyncpa %s8, 0
    %10 = vsyncpa [#allocation9], 0
    %s11 = scalar_lea.sflag [#allocation9], 1
    %12 = vsyncpa %s11, 0
    %13 = vsyncpa [#allocation7], 0
    %s14 = scalar_lea.sflag [#allocation7], 1
    %15 = vsyncpa %s14, 0
    loop: start=0, step=1, limit=14
    $region2: #{tpu_custom_call.1} parent=1 // loop_pre_header
      _
    $region3: #{tpu_custom_call.1} parent=1 // loop_header
      %s17 = sphi 0, %s21
      %p18 = scmp.ge.s32.totalorder %s17, 14
      %s24 = sphi 0, %s43
      %s25 = sphi 0, %s39
      %s26 = sphi 0, %s35
      %s27 = sphi 0, %s24
      %s28 = sphi 0, %s25
      %s29 = sphi 0, %s26
      %s30 = sphi 0, %s27
      %s31 = sphi 0, %s28
      %s32 = sphi 0, %s29
      %s52 = sphi 0, %s54
      %s55 = sphi 0, %s52
      %s56 = sphi 0, %s55
      %s72 = sphi 0, %s56
      %s80 = sphi 0, %s82
      %s83 = sphi 0, %s80
      %s84 = sphi 0, %s83
      %s100 = sphi 0, %s84
      %s106 = sphi 0, %s108
      %s109 = sphi 0, %s106
      %s110 = sphi 0, %s109
      %s126 = sphi 0, %s110
    $region4: #{tpu_custom_call.1} parent=1 // loop_header_branch
      %20 = sbr.rel (%p18) target = $region8
    $region5: #{tpu_custom_call.1} parent=1 // loop_body
      %s22 = ssub.s32 %s17, 1
      %s23 = ssub.s32 %s17, 2
      %s33 = sadd.s32 1, %s26
      %p34 = scmp.ge.s32.totalorder %s33, 3
      %s35 = scalar_select %p34, 0, %s33
      %s36 = sadd.s32 1, %s25
      %s37 = scalar_select %p34, %s36, %s25
      %p38 = scmp.ge.s32.totalorder %s37, 2
      %s39 = scalar_select %p38, 0, %s37
      %s40 = sadd.s32 1, %s24
      %s41 = scalar_select %p38, %s40, %s24
      %p42 = scmp.ge.s32.totalorder %s41, 2
      %s43 = scalar_select %p42, 0, %s41
      %s44 = sadd.s32 %s26, 1
      %s45 = sadd.s32 %s35, 1
      %s46 = ssub.s32 %s24, %s43
      %s47 = ssub.s32 %s44, %s45
      %s48 = sor.u32 %s46, %s47
      %s49 = ssub.s32 %s25, %s39
      %s50 = sor.u32 %s48, %s49
      %p51 = scmp.eq.s32.totalorder %s50, 0
      %s53 = sadd.s32 %s52, 1
      %s54 = scalar_select %p51, %s52, %s53
      %p57 = pneg %p51
      %p58 = scmp.eq.s32.totalorder %s17, 11
      %p59 = por %p57, %p58
      %p60 = scmp.ne.s32.totalorder %s52, %s55
      %p61 = scmp.eq.s32.totalorder %s17, 0
      %p62 = por %p60, %p61
      %p63 = scmp.ne.s32.totalorder %s52, %s55
      %p64 = scmp.eq.s32.totalorder %s22, 11
      %p65 = por %p63, %p64
      %p66 = scmp.ne.s32.totalorder %s55, %s56
      %p67 = scmp.eq.s32.totalorder %s22, 0
      %p68 = por %p66, %p67
      %p69 = scmp.ne.s32.totalorder %s55, %s56
      %p70 = scmp.eq.s32.totalorder %s23, 11
      %p71 = por %p69, %p70
      %p73 = scmp.ne.s32.totalorder %s56, %s72
      %p74 = scmp.eq.s32.totalorder %s23, 0
      %p75 = por %p73, %p74
      %s76 = ssub.s32 %s24, %s43
      %s77 = ssub.s32 %s25, %s39
      %s78 = sor.u32 %s76, %s77
      %p79 = scmp.eq.s32.totalorder %s78, 0
      %s81 = sadd.s32 %s80, 1
      %s82 = scalar_select %p79, %s80, %s81
      %p85 = pneg %p79
      %p86 = scmp.eq.s32.totalorder %s17, 11
      %p87 = por %p85, %p86
      %p88 = scmp.ne.s32.totalorder %s80, %s83
      %p89 = scmp.eq.s32.totalorder %s17, 0
      %p90 = por %p88, %p89
      %p91 = scmp.ne.s32.totalorder %s80, %s83
      %p92 = scmp.eq.s32.totalorder %s22, 11
      %p93 = por %p91, %p92
      %p94 = scmp.ne.s32.totalorder %s83, %s84
      %p95 = scmp.eq.s32.totalorder %s22, 0
      %p96 = por %p94, %p95
      %p97 = scmp.ne.s32.totalorder %s83, %s84
      %p98 = scmp.eq.s32.totalorder %s23, 11
      %p99 = por %p97, %p98
      %p101 = scmp.ne.s32.totalorder %s84, %s100
      %p102 = scmp.eq.s32.totalorder %s23, 0
      %p103 = por %p101, %p102
      %s104 = ssub.s32 %s24, %s43
      %p105 = scmp.eq.s32.totalorder %s104, 0
      %s107 = sadd.s32 %s106, 1
      %s108 = scalar_select %p105, %s106, %s107
      %p111 = pneg %p105
      %p112 = scmp.eq.s32.totalorder %s17, 11
      %p113 = por %p111, %p112
      %p114 = scmp.ne.s32.totalorder %s106, %s109
      %p115 = scmp.eq.s32.totalorder %s17, 0
      %p116 = por %p114, %p115
      %p117 = scmp.ne.s32.totalorder %s106, %s109
      %p118 = scmp.eq.s32.totalorder %s22, 11
      %p119 = por %p117, %p118
      %p120 = scmp.ne.s32.totalorder %s109, %s110
      %p121 = scmp.eq.s32.totalorder %s22, 0
      %p122 = por %p120, %p121
      %p123 = scmp.ne.s32.totalorder %s109, %s110
      %p124 = scmp.eq.s32.totalorder %s23, 11
      %p125 = por %p123, %p124
      %p127 = scmp.ne.s32.totalorder %s110, %s126
      %p128 = scmp.eq.s32.totalorder %s23, 0
      %p129 = por %p127, %p128
      %p130 = scmp.le.s32.totalorder 1, %s17
      %p131 = scmp.lt.s32.totalorder %s17, 13
      %p132 = pnand %p130, %p131
      %p133 = pneg %p132
      // Predicated region
      $region9: #{tpu_custom_call.1} parent=5 // pred_check
        _
      $region10: #{tpu_custom_call.1} parent=5 // pred_check_branch
        %135 = sbr.rel (%p132) target = $region12
      $region11: #{tpu_custom_call.1} parent=5 // pred_region
        %s136 = ssub.s32 %s17, 1
      $region12: #{tpu_custom_call.1} parent=5 // pred_fallthru
        _
      %p137 = scmp.lt.s32.totalorder %s17, 12
      // Predicated region
      $region13: #{tpu_custom_call.1} parent=5 // pred_check
        %p138 = pneg %p137
      $region14: #{tpu_custom_call.1} parent=5 // pred_check_branch
        %140 = sbr.rel (%p138) target = $region16
      $region15: #{tpu_custom_call.1} parent=5 // pred_region
        // Predicated region
        $region17: #{tpu_custom_call.1} parent=15 // pred_check
          %p141 = pneg %p62
        $region18: #{tpu_custom_call.1} parent=15 // pred_check_branch
          %143 = sbr.rel (%p141) target = $region20
        $region19: #{tpu_custom_call.1} parent=15 // pred_region
          %s144 = sand.u32 %s52, 1
          %s145 = scalar_lea.sflag [#allocation6], %s144
          %s146 = sand.u32 %s52, 1
          %s147 = smul.addr %s146, 16
          %s148 = scalar_lea.vmem [#allocation5], %s147
          %s149 = sadd.s32 %s26, 1
          %s150 = smul.u32 4, %s25
          %s152 = ssub.s32 256, 256
          %153 = vsyncadd %s145, %s152
          %s154 = smul.addr %s149, 8
          %s155 = sadd.s32 %s150, %s154
          %s156 = smul.addr %s24, 32
          %s157 = sadd.s32 %s155, %s156
          %s158 = smul.addr %s157, 64
          %s159 = scalar_lea.hbm %s0, %s158
          %s160 = sshll.u32 %s148, 4
          %s161 = int_to_ptr.vmem [resolvable:$true] %s160
          %166 = dma.hbm_to_vmem [thread:$0]  %s159, 256, %s161, %s145, 64, 64, 4
        $region20: #{tpu_custom_call.1} parent=15 // pred_fallthru
          _
        // Predicated region
        $region21: #{tpu_custom_call.1} parent=15 // pred_check
          %p167 = pneg %p90
        $region22: #{tpu_custom_call.1} parent=15 // pred_check_branch
          %169 = sbr.rel (%p167) target = $region24
        $region23: #{tpu_custom_call.1} parent=15 // pred_region
          %s170 = sand.u32 %s80, 1
          %s171 = scalar_lea.sflag [#allocation9], %s170
          %s172 = sand.u32 %s80, 1
          %s173 = smul.addr %s172, 16
          %s174 = scalar_lea.vmem [#allocation8], %s173
          %s176 = ssub.s32 256, 256
          %177 = vsyncadd %s171, %s176
          %s178 = smul.addr %s24, 4
          %s179 = sadd.s32 %s25, %s178
          %s180 = smul.addr %s179, 128
          %s181 = scalar_lea.hbm %s1, %s180
          %s182 = sshll.u32 %s174, 4
          %s183 = int_to_ptr.vmem [resolvable:$true] %s182
          %188 = dma.hbm_to_vmem [thread:$0]  %s181, 256, %s183, %s171, 256, 128, 8
        $region24: #{tpu_custom_call.1} parent=15 // pred_fallthru
          _
      $region16: #{tpu_custom_call.1} parent=5 // pred_fallthru
        _
      %p189 = scmp.le.s32.totalorder 1, %s17
      %p190 = scmp.lt.s32.totalorder %s17, 13
      %p191 = pnand %p189, %p190
      %p192 = pneg %p191
      // Predicated region
      $region25: #{tpu_custom_call.1} parent=5 // pred_check
        _
      $region26: #{tpu_custom_call.1} parent=5 // pred_check_branch
        %194 = sbr.rel (%p191) target = $region28
      $region27: #{tpu_custom_call.1} parent=5 // pred_region
        %s195 = ssub.s32 %s17, 1
        %s196 = sand.u32 %s55, 1
        %s197 = scalar_lea.sflag [#allocation6], %s196
        %s198 = sand.u32 %s55, 1
        %s199 = smul.addr %s198, 16
        %s200 = scalar_lea.vmem [#allocation5], %s199
        // Predicated region
        $region29: #{tpu_custom_call.1} parent=27 // pred_check
          %p201 = pneg %p68
        $region30: #{tpu_custom_call.1} parent=27 // pred_check_branch
          %203 = sbr.rel (%p201) target = $region32
        $region31: #{tpu_custom_call.1} parent=27 // pred_region
          %204 = dma.done %s197, 256
        $region32: #{tpu_custom_call.1} parent=27 // pred_fallthru
          _
        %s205 = sand.u32 %s83, 1
        %s206 = scalar_lea.sflag [#allocation9], %s205
        %s207 = sand.u32 %s83, 1
        %s208 = smul.addr %s207, 16
        %s209 = scalar_lea.vmem [#allocation8], %s208
        // Predicated region
        $region33: #{tpu_custom_call.1} parent=27 // pred_check
          %p210 = pneg %p96
        $region34: #{tpu_custom_call.1} parent=27 // pred_check_branch
          %212 = sbr.rel (%p210) target = $region36
        $region35: #{tpu_custom_call.1} parent=27 // pred_region
          %213 = dma.done %s206, 256
        $region36: #{tpu_custom_call.1} parent=27 // pred_fallthru
          _
        %s214 = sand.u32 %s55, 1
        %s215 = scalar_lea.sflag [#allocation6], %s214
        %s216 = sand.u32 %s55, 1
        %s217 = smul.addr %s216, 16
        %s218 = scalar_lea.vmem [#allocation5], %s217
        %p219 = pneg %p68
        %p220 = pneg %p65
        %s221 = sand.u32 %s83, 1
        %s222 = scalar_lea.sflag [#allocation9], %s221
        %s223 = sand.u32 %s83, 1
        %s224 = smul.addr %s223, 16
        %s225 = scalar_lea.vmem [#allocation8], %s224
        %p226 = pneg %p96
        %p227 = pneg %p93
        %p228 = pneg %p122
        %p229 = pneg %p119
        %s230 = sand.u32 %s109, 1
        %s231 = scalar_lea.sflag [#allocation7], %s230
        %s232 = sand.u32 %s109, 1
        %s233 = smul.addr %s232, 8
        %s234 = scalar_lea.vmem [#allocation10], %s233
        %s235 = sadd.s32 %s29, 1
        %s236 = smul.u32 4, %s28
        %p237 = scmp.eq.s32.totalorder %s28, 0
        // Predicated region
        $region37: #{tpu_custom_call.1} parent=27 // pred_check
          %p238 = pneg %p237
        $region38: #{tpu_custom_call.1} parent=27 // pred_check_branch
          %240 = sbr.rel (%p238) target = $region40
        $region39: #{tpu_custom_call.1} parent=27 // pred_region
          %s241 = smul.u32 %s29, 8
          %s242 = scalar_lea.vmem [#allocation2], %s241
          %243 = vst [vmem:[%s242] sm:$0xff] 0.0
          %s244 = scalar_lea.vmem [#allocation3], %s241
          %245 = vst [vmem:[%s244] sm:$0xff] 0.0
          %s246 = scalar_lea.vmem [#allocation4], %s241
          %247 = vst [vmem:[%s246] sm:$0xff] 0.0
        $region40: #{tpu_custom_call.1} parent=27 // pred_fallthru
          _
        %s248 = sadd.s32 %s29, 1
        %v249 = vld [vmem:[%s200] sm:$0xf]
        %v250 = vld [vmem:[%s200 + $0x4] sm:$0xf]
        %v251 = vld [vmem:[%s200 + $0x8] sm:$0xf]
        %v252 = vld [vmem:[%s200 + $0xc] sm:$0xf]
        %v253 = vunpack.c.l.bf16 %v249
        %v254 = vunpack.c.l.bf16 %v250
        %v255 = vunpack.c.l.bf16 %v251
        %v256 = vunpack.c.l.bf16 %v252
        %v257 = vld [vmem:[%s209] sm:$0xff]
        %s258 = scalar_lea.vmem %s209, 8 [#allocation8]
        %v259 = vld [vmem:[%s258] sm:$0xff]
        %v260 = vunpack.c.0.s8 %v257
        %v261 = vunpack.c.1.s8 %v257
        %v262 = vunpack.c.2.s8 %v257
        %v263 = vunpack.c.3.s8 %v257
        %v264 = vstv %s248
        %vm265 = vcmp.eq.s32.totalorder %v260, %v264
        %vm266 = vcmp.eq.s32.totalorder %v261, %v264
        %vm267 = vcmp.eq.s32.totalorder %v262, %v264
        %vm268 = vcmp.eq.s32.totalorder %v263, %v264
        %v269 = vsel %vm265, 1, 0
        %v270 = vsel %vm266, 1, 0
        %v271 = vsel %vm267, 1, 0
        %v272 = vsel %vm268, 1, 0
        %v273 = vcvt.s32.f32 %v269
        %v274 = vcvt.s32.f32 %v270
        %v275 = vcvt.s32.f32 %v271
        %v276 = vcvt.s32.f32 %v272
        %v277 = vunpack.c.0.s8 %v259
        %v278 = vunpack.c.1.s8 %v259
        %v279 = vunpack.c.2.s8 %v259
        %v280 = vunpack.c.3.s8 %v259
        %vm281 = vcmp.eq.s32.totalorder %v277, %v264
        %vm282 = vcmp.eq.s32.totalorder %v278, %v264
        %vm283 = vcmp.eq.s32.totalorder %v279, %v264
        %vm284 = vcmp.eq.s32.totalorder %v280, %v264
        %v285 = vsel %vm281, 1, 0
        %v286 = vsel %vm282, 1, 0
        %v287 = vsel %vm283, 1, 0
        %v288 = vsel %vm284, 1, 0
        %v289 = vcvt.s32.f32 %v285
        %v290 = vcvt.s32.f32 %v286
        %v291 = vcvt.s32.f32 %v287
        %v292 = vcvt.s32.f32 %v288
        %v293 = vadd.f32 %v289, 0.1
        %v294 = vadd.f32 %v290, 0.1
        %v295 = vadd.f32 %v291, 0.1
        %v296 = vadd.f32 %v292, 0.1
        %v297 = vmul.f32 %v273, %v293
        %v298 = vmul.f32 %v274, %v294
        %v299 = vmul.f32 %v275, %v295
        %v300 = vmul.f32 %v276, %v296
        %v301 = vsub.f32 1.0, %v273
        %v302 = vsub.f32 1.0, %v274
        %v303 = vsub.f32 1.0, %v275
        %v304 = vsub.f32 1.0, %v276
        %v305 = vadd.f32 %v293, %v301
        %v306 = vadd.f32 %v294, %v302
        %v307 = vadd.f32 %v295, %v303
        %v308 = vadd.f32 %v296, %v304
        %s309 = smul.u32 %s29, 8
        %s310 = scalar_lea.vmem [#allocation2], %s309
        %v311 = vld [vmem:[%s310] sm:$0xff]
        %v312 = vmul.f32 %v253, %v297
        %v313 = vmul.f32 %v254, %v298
        %v314 = vmul.f32 %v255, %v299
        %v315 = vmul.f32 %v256, %v300
        %v316 = vadd.f32 %v312, %v313
        %v317 = vadd.f32 %v316, %v314
        %v318 = vadd.f32 %v317, %v315
        %v319 = vadd.f32 %v311, %v318
        %320 = vst [vmem:[%s310] sm:$0xff] %v319
        %s321 = scalar_lea.vmem [#allocation3], %s309
        %v322 = vld [vmem:[%s321] sm:$0xff]
        %v323 = vmul.f32 %v253, %v305
        %v324 = vmul.f32 %v254, %v306
        %v325 = vmul.f32 %v255, %v307
        %v326 = vmul.f32 %v256, %v308
        %v327 = vadd.f32 %v323, %v324
        %v328 = vadd.f32 %v327, %v325
        %v329 = vadd.f32 %v328, %v326
        %v330 = vadd.f32 %v322, %v329
        %331 = vst [vmem:[%s321] sm:$0xff] %v330
        %s332 = scalar_lea.vmem [#allocation4], %s309
        %v333 = vld [vmem:[%s332] sm:$0xff]
        %v334 = vadd.f32 %v297, %v298
        %v335 = vadd.f32 %v334, %v299
        %v336 = vadd.f32 %v335, %v300
        %v337 = vadd.f32 %v333, %v336
        %338 = vst [vmem:[%s332] sm:$0xff] %v337
        %p339 = scmp.eq.s32.totalorder %s28, 1
        %p340 = scmp.eq.s32.totalorder %s29, 2
        %p341 = pnand %p339, %p340
        %p342 = pneg %p341
        // Predicated region
        $region41: #{tpu_custom_call.1} parent=27 // pred_check
          _
        $region42: #{tpu_custom_call.1} parent=27 // pred_check_branch
          %344 = sbr.rel (%p341) target = $region44
        $region43: #{tpu_custom_call.1} parent=27 // pred_region
          %v345 = vld [vmem:[#allocation2] sm:$0xff]
          %346 = vadd.xlane.f32.xlu0 %v345
          %v347 = vpop.xlane.xlu0 %346
          %v348 = vrot.slane %v347, 4
          %v349 = vadd.f32 %v347, %v348
          %v350 = vrot.slane %v349, 2
          %v351 = vadd.f32 %v349, %v350
          %v352 = vrot.slane %v351, 1
          %v353 = vadd.f32 %v351, %v352
          %s354 = vtos %v353
          %v355 = vld [vmem:[#allocation3] sm:$0xff]
          %356 = vadd.xlane.f32.xlu0 %v355
          %v357 = vpop.xlane.xlu0 %356
          %v358 = vrot.slane %v357, 4
          %v359 = vadd.f32 %v357, %v358
          %v360 = vrot.slane %v359, 2
          %v361 = vadd.f32 %v359, %v360
          %v362 = vrot.slane %v361, 1
          %v363 = vadd.f32 %v361, %v362
          %s364 = vtos %v363
          %v365 = vld [vmem:[#allocation4] sm:$0xff]
          %366 = vadd.xlane.f32.xlu0 %v365
          %v367 = vpop.xlane.xlu0 %366
          %v368 = vrot.slane %v367, 4
          %v369 = vadd.f32 %v367, %v368
          %v370 = vrot.slane %v369, 2
          %v371 = vadd.f32 %v369, %v370
          %v372 = vrot.slane %v371, 1
          %v373 = vadd.f32 %v371, %v372
          %s374 = vtos %v373
          %s375 = smul.f32 %s354, 26.0
          %s376 = sadd.f32 %s375, 0.0001
          %s377 = smul.f32 %s374, 25.0
          %s378 = sadd.f32 %s364, %s377
          %s379 = sadd.f32 %s378, 0.0001
          %v380 = vstv %s379
          %v381 = vrcp.pop %v380
          %s382 = vtos %v381
          %s383 = smul.f32 %s376, %s382
          %v384 = vstv %s383
          %385 = vst [vmem:[%s234] sm:$0x1] %v384
          %s386 = scalar_lea.vmem [#allocation2], 8
          %v387 = vld [vmem:[%s386] sm:$0xff]
          %388 = vadd.xlane.f32.xlu0 %v387
          %v389 = vpop.xlane.xlu0 %388
          %v390 = vrot.slane %v389, 4
          %v391 = vadd.f32 %v389, %v390
          %v392 = vrot.slane %v391, 2
          %v393 = vadd.f32 %v391, %v392
          %v394 = vrot.slane %v393, 1
          %v395 = vadd.f32 %v393, %v394
          %s396 = vtos %v395
          %s397 = scalar_lea.vmem [#allocation3], 8
          %v398 = vld [vmem:[%s397] sm:$0xff]
          %399 = vadd.xlane.f32.xlu0 %v398
          %v400 = vpop.xlane.xlu0 %399
          %v401 = vrot.slane %v400, 4
          %v402 = vadd.f32 %v400, %v401
          %v403 = vrot.slane %v402, 2
          %v404 = vadd.f32 %v402, %v403
          %v405 = vrot.slane %v404, 1
          %v406 = vadd.f32 %v404, %v405
          %s407 = vtos %v406
          %s408 = scalar_lea.vmem [#allocation4], 8
          %v409 = vld [vmem:[%s408] sm:$0xff]
          %410 = vadd.xlane.f32.xlu0 %v409
          %v411 = vpop.xlane.xlu0 %410
          %v412 = vrot.slane %v411, 4
          %v413 = vadd.f32 %v411, %v412
          %v414 = vrot.slane %v413, 2
          %v415 = vadd.f32 %v413, %v414
          %v416 = vrot.slane %v415, 1
          %v417 = vadd.f32 %v415, %v416
          %s418 = vtos %v417
          %s419 = smul.f32 %s396, 26.0
          %s420 = sadd.f32 %s419, 0.0001
          %s421 = smul.f32 %s418, 25.0
          %s422 = sadd.f32 %s407, %s421
          %s423 = sadd.f32 %s422, 0.0001
          %v424 = vstv %s423
          %v425 = vrcp.pop %v424
          %s426 = vtos %v425
          %s427 = smul.f32 %s420, %s426
          %v428 = vstv %s427
          %429 = vst [vmem:[%s234 + $0x1] sm:$0x1] %v428
          %s430 = scalar_lea.vmem [#allocation2], 16
          %v431 = vld [vmem:[%s430] sm:$0xff]
          %432 = vadd.xlane.f32.xlu0 %v431
          %v433 = vpop.xlane.xlu0 %432
          %v434 = vrot.slane %v433, 4
          %v435 = vadd.f32 %v433, %v434
          %v436 = vrot.slane %v435, 2
          %v437 = vadd.f32 %v435, %v436
          %v438 = vrot.slane %v437, 1
          %v439 = vadd.f32 %v437, %v438
          %s440 = vtos %v439
          %s441 = scalar_lea.vmem [#allocation3], 16
          %v442 = vld [vmem:[%s441] sm:$0xff]
          %443 = vadd.xlane.f32.xlu0 %v442
          %v444 = vpop.xlane.xlu0 %443
          %v445 = vrot.slane %v444, 4
          %v446 = vadd.f32 %v444, %v445
          %v447 = vrot.slane %v446, 2
          %v448 = vadd.f32 %v446, %v447
          %v449 = vrot.slane %v448, 1
          %v450 = vadd.f32 %v448, %v449
          %s451 = vtos %v450
          %s452 = scalar_lea.vmem [#allocation4], 16
          %v453 = vld [vmem:[%s452] sm:$0xff]
          %454 = vadd.xlane.f32.xlu0 %v453
          %v455 = vpop.xlane.xlu0 %454
          %v456 = vrot.slane %v455, 4
          %v457 = vadd.f32 %v455, %v456
          %v458 = vrot.slane %v457, 2
          %v459 = vadd.f32 %v457, %v458
          %v460 = vrot.slane %v459, 1
          %v461 = vadd.f32 %v459, %v460
          %s462 = vtos %v461
          %s463 = smul.f32 %s440, 26.0
          %s464 = sadd.f32 %s463, 0.0001
          %s465 = smul.f32 %s462, 25.0
          %s466 = sadd.f32 %s451, %s465
          %s467 = sadd.f32 %s466, 0.0001
          %v468 = vstv %s467
          %v469 = vrcp.pop %v468
          %s470 = vtos %v469
          %s471 = smul.f32 %s464, %s470
          %v472 = vstv %s471
          %473 = vst [vmem:[%s234 + $0x2] sm:$0x1] %v472
        $region44: #{tpu_custom_call.1} parent=27 // pred_fallthru
          _
        %s474 = sand.u32 %s109, 1
        %s475 = scalar_lea.sflag [#allocation7], %s474
        %s476 = sand.u32 %s109, 1
        %s477 = smul.addr %s476, 8
        %s478 = scalar_lea.vmem [#allocation10], %s477
        // Predicated region
        $region45: #{tpu_custom_call.1} parent=27 // pred_check
          %p479 = pneg %p119
        $region46: #{tpu_custom_call.1} parent=27 // pred_check_branch
          %481 = sbr.rel (%p479) target = $region48
        $region47: #{tpu_custom_call.1} parent=27 // pred_region
          %s483 = ssub.s32 128, 128
          %484 = vsyncadd %s475, %s483
          %s485 = smul.addr %s27, 128
          %s486 = scalar_lea.hbm %s2, %s485
          %s488 = sshll.u32 %s478, 4
          %s489 = int_to_ptr.vmem [resolvable:$true] %s488
          %491 = dma.vmem_to_hbm [thread:$0]  %s489, 128, %s486, %s475
        $region48: #{tpu_custom_call.1} parent=27 // pred_fallthru
          _
      $region28: #{tpu_custom_call.1} parent=5 // pred_fallthru
        _
      %p492 = scmp.le.s32.totalorder 2, %s17
      // Predicated region
      $region49: #{tpu_custom_call.1} parent=5 // pred_check
        %p493 = pneg %p492
      $region50: #{tpu_custom_call.1} parent=5 // pred_check_branch
        %495 = sbr.rel (%p493) target = $region52
      $region51: #{tpu_custom_call.1} parent=5 // pred_region
        %s496 = ssub.s32 %s17, 2
        // Predicated region
        $region53: #{tpu_custom_call.1} parent=51 // pred_check
          %p497 = pneg %p125
        $region54: #{tpu_custom_call.1} parent=51 // pred_check_branch
          %499 = sbr.rel (%p497) target = $region56
        $region55: #{tpu_custom_call.1} parent=51 // pred_region
          %s500 = sand.u32 %s110, 1
          %s501 = scalar_lea.sflag [#allocation7], %s500
          %s502 = sand.u32 %s110, 1
          %s503 = smul.addr %s502, 8
          %s504 = scalar_lea.vmem [#allocation10], %s503
          %505 = dma.done %s501, 128
        $region56: #{tpu_custom_call.1} parent=51 // pred_fallthru
          _
      $region52: #{tpu_custom_call.1} parent=5 // pred_fallthru
        _
    $region6: #{tpu_custom_call.1} parent=1 // loop_footer
      %s21 = sadd.s32 1, %s17
    $region7: #{tpu_custom_call.1} parent=1 // loop_footer_branch
      %16 = sbr.rel target = $region3
    $region8: #{tpu_custom_call.1} parent=1 // loop_exit
      _
    %506 = vsyncpa [#allocation6], 1
    %s507 = scalar_lea.sflag [#allocation6], 1
    %508 = vsyncpa %s507, 1
    %509 = vsyncpa [#allocation9], 1
    %s510 = scalar_lea.sflag [#allocation9], 1
    %511 = vsyncpa %s510, 1
    %512 = vsyncpa [#allocation7], 1
    %s513 = scalar_lea.sflag [#allocation7], 1
    %514 = vsyncpa %s513, 1

</llo_original>
